<compile_context>
chip_gen: v7x
topology: tpu7x:2x2x1
jax: 0.10.0
libtpu: 0.0.40
codegen_flags: <defaults>
</compile_context>

<pallas_src>
import math

import jax
import jax.numpy as jnp
from jax.experimental import pallas as pl
from jax.experimental.pallas import tpu as pltpu

_LANE_CANDIDATES = (4096, 2048, 1024, 512, 256, 128)


def _choose_tiling(chw, itemsize, target_tile_bytes=1 << 20):
    """Pick (rows, lane, row_tile): reshape each batch slab to (rows, lane).

    lane is a multiple of 128 (lane-dense last dim); row_tile is a multiple of
    8 (or == rows when rows < 8) sized for roughly `target_tile_bytes` blocks.
    Returns None if the slab cannot be laid out lane-dense (caller falls back
    to plain XLA).
    """
    if chw % 128 != 0:
        return None
    lane = None
    for cand in _LANE_CANDIDATES:            # prefer wide lanes with >= 8 rows
        if chw % cand == 0 and chw // cand >= 8:
            lane = cand
            break
    if lane is None:                         # small slab: widest dividing lane
        for cand in _LANE_CANDIDATES:
            if chw % cand == 0:
                lane = cand
                break
    rows = chw // lane
    if rows < 8:
        # Block sublane dim equals the full array dim -> allowed by (8,128) rule.
        return rows, lane, rows
    row_tile = max(8, (target_tile_bytes // (lane * itemsize)) // 8 * 8)
    row_tile = min((rows // 8) * 8, row_tile)
    # Prefer a tile that divides rows evenly (avoids a padded trailing tile).
    while row_tile > 8 and rows % row_tile:
        row_tile -= 8
    return rows, lane, row_tile


def _noise_kernel(sig_ref, noi_ref, x_ref, noise_ref, out_ref):
    # sig_ref / noi_ref: SMEM (B,) float32 (scalar prefetch).
    # x_ref / noise_ref / out_ref: VMEM tiles of shape (1, row_tile, lane).
    b = pl.program_id(0)
    s = sig_ref[b]                              # f32 scalars straight from SMEM
    t = noi_ref[b]
    x32 = x_ref[...].astype(jnp.float32)
    n32 = noise_ref[...].astype(jnp.float32)
    out_ref[...] = (s * x32 + t * n32).astype(out_ref.dtype)


def noise_schedule_apply(x, noise, signal_std_b, noise_std_b):
    """Pallas path: noised[b] = signal_std_b[b] * x[b] + noise_std_b[b] * noise[b]."""
    B = x.shape[0]
    chw = math.prod(x.shape[1:])
    itemsize = jnp.dtype(x.dtype).itemsize
    tiling = _choose_tiling(chw, itemsize)
    assert tiling is not None, "C*H*W must be a multiple of 128 for the Pallas path"
    rows, lane, row_tile = tiling
    n_row_tiles = pl.cdiv(rows, row_tile)

    x3 = x.reshape(B, rows, lane)
    n3 = noise.reshape(B, rows, lane)
    sig = signal_std_b.astype(jnp.float32)       # keep f32: SMEM is 32-bit
    noi = noise_std_b.astype(jnp.float32)

    block = (1, row_tile, lane)
    idx = lambda b, r, *_prefetch: (b, r, 0)

    grid_spec = pltpu.PrefetchScalarGridSpec(
        num_scalar_prefetch=2,
        grid=(B, n_row_tiles),
        in_specs=[pl.BlockSpec(block, idx),       # x
                  pl.BlockSpec(block, idx)],      # noise
        out_specs=pl.BlockSpec(block, idx),
    )

    cost = pl.CostEstimate(
        flops=3 * B * chw,                        # 2 mul + 1 add per element
        transcendentals=0,
        bytes_accessed=3 * B * chw * itemsize,    # read x, read noise, write out
    )

    noised = pl.pallas_call(
        _noise_kernel,
        out_shape=jax.ShapeDtypeStruct((B, rows, lane), x.dtype),
        grid_spec=grid_spec,
        compiler_params=pltpu.CompilerParams(
            dimension_semantics=("parallel", "parallel")),
        cost_estimate=cost,
    )(sig, noi, x3, n3)

    return noised.reshape(x.shape)


class NoiseSchedule:
    """JAX/Pallas port of the PyTorch NoiseSchedule module."""

    def __init__(self, t=1000, beta_min=0.00085, beta_max=0.012):
        self.t = t
        self.beta_min = beta_min
        self.beta_max = beta_max
        betas = jnp.linspace(beta_min ** 0.5, beta_max ** 0.5, t,
                             dtype=jnp.float32) ** 2
        alphas = 1.0 - betas
        alpha_prods = jnp.cumprod(alphas, axis=0)
        self.betas = betas
        self.alphas = alphas
        self.alpha_prods = alpha_prods
        self.signal_stds = jnp.sqrt(alpha_prods)
        self.noise_stds = jnp.sqrt(1.0 - alpha_prods)

    def __call__(self, x, key, use_pallas=None):
        B = x.shape[0]
        k_noise, k_t = jax.random.split(key)
        timesteps = jax.random.randint(k_t, (B,), 0, self.t, dtype=jnp.int32)
        # Small table gather (glue) in plain JAX; scalars stay float32.
        sig_b = self.signal_stds[timesteps]
        noi_b = self.noise_stds[timesteps]
        # Matches torch.randn_like(x).
        noise = jax.random.normal(k_noise, x.shape, dtype=x.dtype)

        chw = math.prod(x.shape[1:])
        itemsize = jnp.dtype(x.dtype).itemsize
        if use_pallas is None:
            # Below ~1 MiB of HBM traffic, pallas_call fixed overhead dominates;
            # let XLA fuse the elementwise op instead.
            use_pallas = (3 * B * chw * itemsize) >= (1 << 20)
        use_pallas = use_pallas and (chw % 128 == 0)

        if use_pallas:
            noised = noise_schedule_apply(x, noise, sig_b, noi_b)
        else:
            bshape = (B,) + (1,) * (x.ndim - 1)
            noised = (sig_b.reshape(bshape) * x
                      + noi_b.reshape(bshape) * noise).astype(x.dtype)
        return noised, timesteps, noise


if __name__ == "__main__":
    key = jax.random.PRNGKey(0)
    k_x, k_fwd = jax.random.split(key)

    B, C, H, W = 2, 4, 16, 16
    x = jax.random.normal(k_x, (B, C, H, W), dtype=jnp.float32)

    sched = NoiseSchedule(t=1000, beta_min=0.00085, beta_max=0.012)
    # Force the Pallas path even at this tiny demo size (the auto heuristic
    # would route shapes this small to the fused-XLA fallback).
    noised, timesteps, noise = sched(x, k_fwd, use_pallas=True)
    jax.block_until_ready(noised)
    jax.block_until_ready(timesteps)
    jax.block_until_ready(noise)

    assert noised.shape == (B, C, H, W)
    assert noise.shape == (B, C, H, W)
    assert timesteps.shape == (B,)
    assert bool(jnp.all((timesteps >= 0) & (timesteps < sched.t)))

    # noised must equal the per-batch FMA of x with the drawn noise.
    sig = sched.signal_stds[timesteps].reshape(B, 1, 1, 1)
    noi = sched.noise_stds[timesteps].reshape(B, 1, 1, 1)
    ref = sig * x + noi * noise
    assert jnp.allclose(noised, ref, atol=1e-5, rtol=1e-5)

    # The noise should look like a standard normal (loose moment checks).
    assert abs(float(jnp.mean(noise))) < 0.2
    assert abs(float(jnp.std(noise)) - 1.0) < 0.2

    print("KERNEL_OK")
</pallas_src>

<mosaic_0001>
module attributes {stable_mosaic.version = 11 : i64} {
  func.func @_noise_kernel(%arg0: i32, %arg1: i32, %arg2: memref<2xf32, #tpu.memory_space<smem>>, %arg3: memref<2xf32, #tpu.memory_space<smem>>, %arg4: memref<1x8x128xf32, #tpu.memory_space<vmem>>, %arg5: memref<1x8x128xf32, #tpu.memory_space<vmem>>, %arg6: memref<1x8x128xf32, #tpu.memory_space<vmem>>) attributes {dimension_semantics = [#tpu.dimension_semantics<parallel>, #tpu.dimension_semantics<parallel>], iteration_bounds = array<i64: 2, 1>, scalar_prefetch = 2 : i64, scratch_operands = 0 : i64, tpu.core_type = #tpu.core_type<tc>, window_params = [{transform_indices = @transform_0, window_bounds = array<i64: 1, 8, 128>}, {transform_indices = @transform_1, window_bounds = array<i64: 1, 8, 128>}, {transform_indices = @transform_2, window_bounds = array<i64: 1, 8, 128>}]} {
    %0 = arith.index_cast %arg0 : i32 to index
    %1 = memref.load %arg2[%0] : memref<2xf32, #tpu.memory_space<smem>>
    %2 = arith.index_cast %arg0 : i32 to index
    %3 = memref.load %arg3[%2] : memref<2xf32, #tpu.memory_space<smem>>
    %c0 = arith.constant 0 : index
    %c0_0 = arith.constant 0 : index
    %c0_1 = arith.constant 0 : index
    %4 = vector.load %arg4[%c0, %c0_0, %c0_1] : memref<1x8x128xf32, #tpu.memory_space<vmem>>, vector<1x8x128xf32>
    %c0_2 = arith.constant 0 : index
    %c0_3 = arith.constant 0 : index
    %c0_4 = arith.constant 0 : index
    %5 = vector.load %arg5[%c0_2, %c0_3, %c0_4] : memref<1x8x128xf32, #tpu.memory_space<vmem>>, vector<1x8x128xf32>
    %6 = vector.broadcast %1 : f32 to vector<1x8x128xf32>
    %7 = arith.mulf %6, %4 : vector<1x8x128xf32>
    %8 = vector.broadcast %3 : f32 to vector<1x8x128xf32>
    %9 = arith.mulf %8, %5 : vector<1x8x128xf32>
    %10 = arith.addf %7, %9 : vector<1x8x128xf32>
    %c0_5 = arith.constant 0 : index
    %c0_6 = arith.constant 0 : index
    %c0_7 = arith.constant 0 : index
    %11 = vector.load %arg6[%c0_5, %c0_6, %c0_7] : memref<1x8x128xf32, #tpu.memory_space<vmem>>, vector<1x8x128xf32>
    tpu.vector_store %arg6[%c0_5, %c0_6, %c0_7], %10 {strides = array<i32>} : memref<1x8x128xf32, #tpu.memory_space<vmem>>, vector<1x8x128xf32>,
    return
  }
  func.func @transform_0(%arg0: i32, %arg1: i32, %arg2: memref<2xf32, #tpu.memory_space<smem>>, %arg3: memref<2xf32, #tpu.memory_space<smem>>) -> (i32, i32, i32) {
    %c0_i32 = arith.constant 0 : i32
    %c0_i32_0 = arith.constant 0 : i32
    return %arg0, %arg1, %c0_i32 : i32, i32, i32
  }
  func.func @transform_1(%arg0: i32, %arg1: i32, %arg2: memref<2xf32, #tpu.memory_space<smem>>, %arg3: memref<2xf32, #tpu.memory_space<smem>>) -> (i32, i32, i32) {
    %c0_i32 = arith.constant 0 : i32
    %c0_i32_0 = arith.constant 0 : i32
    return %arg0, %arg1, %c0_i32 : i32, i32, i32
  }
  func.func @transform_2(%arg0: i32, %arg1: i32, %arg2: memref<2xf32, #tpu.memory_space<smem>>, %arg3: memref<2xf32, #tpu.memory_space<smem>>) -> (i32, i32, i32) {
    %c0_i32 = arith.constant 0 : i32
    %c0_i32_0 = arith.constant 0 : i32
    return %arg0, %arg1, %c0_i32 : i32, i32, i32
  }
}

</mosaic_0001>

<llo_original>
// kernel: tpu_custom_call.1
$region0: #{tpu_custom_call.1}
  #allocation0 [shape = 'u32[]', space=smem, size = 0x4, offset = 0x4, fixed_abs, tag = 'smem constant byte address 0x4 - core index']
  #allocation1 [shape = 'u32[144,128]{1,0:T(1,128)}', space=vmem, size = 0x12000, scoped, tag = 'internal scratch']
  #allocation2 [shape = 's32[1]{0}', space=sflag, size = 0x4, scoped, tag = 'scoped memory for tpu_custom_call.1']
  #allocation3 [shape = 'u8[512]{0}', space=smem, size = 0x200, scoped, tag = 'prefetched SMEM operand 0']
  #allocation4 [shape = 'u8[512]{0}', space=smem, size = 0x200, scoped, tag = 'prefetched SMEM operand 1']
  %s0 = inlined_call_operand.hbm [shape: f32[2], index: 0, kind: input, shape index: {}]
  %s1 = inlined_call_operand.vmem [shape: f32[2], index: 1, kind: input, shape index: {}]
  %s2 = inlined_call_operand.hbm [shape: f32[2,8,128], index: 2, kind: input, shape index: {}]
  %s3 = inlined_call_operand.hbm [shape: f32[2,8,128], index: 3, kind: input, shape index: {}]
  %s4 = inlined_call_operand.hbm [shape: f32[2,8,128], index: 4, kind: output, shape index: {}]
  %s5 = sld [smem:[#allocation0]]
  $region49: #{tpu_custom_call.1} parent=0
    _
  %s7 = ssub.s32 1, %s5
  %s8 = scalar_select 0, %s7, %s5
  %10 = dma.hbm_to_smem %s0, 16, [#allocation3], [#allocation2]
  %s11 = sshll.u32 %s1, 4
  %s12 = int_to_ptr.vmem [resolvable:$true] %s11
  %14 = dma.vmem_to_smem %s12, 16, [#allocation4], [#allocation2]
  %15 = dma.done [#allocation2], 32
  %16 = sfence
  $region1: #{tpu_custom_call.1} parent=0
    #allocation5 [shape = 'u8[8192]{0}', space=vmem, size = 0x2000, scoped, tag = 'input window, operand 2']
    #allocation6 [shape = 's32[2]{0}', space=sflag, size = 0x8, scoped, tag = 'scoped memory for tpu_custom_call.1']
    #allocation7 [shape = 's32[2]{0}', space=sflag, size = 0x8, scoped, tag = 'scoped memory for tpu_custom_call.1']
    #allocation8 [shape = 'u8[8192]{0}', space=vmem, size = 0x2000, scoped, tag = 'input window, operand 3']
    #allocation9 [shape = 's32[2]{0}', space=sflag, size = 0x8, scoped, tag = 'scoped memory for tpu_custom_call.1']
    #allocation10 [shape = 'u8[8192]{0}', space=vmem, size = 0x2000, scoped, tag = 'output window, operand 0']
    %17 = vsyncpa [#allocation6], 0
    %s18 = scalar_lea.sflag [#allocation6], 1
    %19 = vsyncpa %s18, 0
    %20 = vsyncpa [#allocation9], 0
    %s21 = scalar_lea.sflag [#allocation9], 1
    %22 = vsyncpa %s21, 0
    %23 = vsyncpa [#allocation7], 0
    %s24 = scalar_lea.sflag [#allocation7], 1
    %25 = vsyncpa %s24, 0
    loop: start=0, step=1, limit=4
    $region2: #{tpu_custom_call.1} parent=1 // loop_pre_header
      _
    $region3: #{tpu_custom_call.1} parent=1 // loop_header
      %s27 = sphi 0, %s31
      %p28 = scmp.ge.s32.totalorder %s27, 4
      %s34 = sphi 0, %s46
      %s35 = sphi 0, %s42
      %s36 = sphi 0, %s34
      %s37 = sphi 0, %s35
      %s38 = sphi 0, %s36
      %s39 = sphi 0, %s37
      %s51 = sphi 0, %s53
      %s54 = sphi 0, %s51
      %s55 = sphi 0, %s54
      %s71 = sphi 0, %s55
      %s79 = sphi 0, %s81
      %s82 = sphi 0, %s79
      %s83 = sphi 0, %s82
      %s99 = sphi 0, %s83
      %s107 = sphi 0, %s109
      %s110 = sphi 0, %s107
      %s111 = sphi 0, %s110
      %s127 = sphi 0, %s111
    $region4: #{tpu_custom_call.1} parent=1 // loop_header_branch
      %30 = sbr.rel (%p28) target = $region8
    $region5: #{tpu_custom_call.1} parent=1 // loop_body
      %s32 = ssub.s32 %s27, 1
      %s33 = ssub.s32 %s27, 2
      %s40 = sadd.s32 1, %s35
      %p41 = scmp.ge.s32.totalorder %s40, 1
      %s42 = scalar_select %p41, 0, %s40
      %s43 = sadd.s32 1, %s34
      %s44 = scalar_select %p41, %s43, %s34
      %p45 = scmp.ge.s32.totalorder %s44, 2
      %s46 = scalar_select %p45, 0, %s44
      %s47 = ssub.s32 %s34, %s46
      %s48 = ssub.s32 %s35, %s42
      %s49 = sor.u32 %s47, %s48
      %p50 = scmp.eq.s32.totalorder %s49, 0
      %s52 = sadd.s32 %s51, 1
      %s53 = scalar_select %p50, %s51, %s52
      %p56 = pneg %p50
      %p57 = scmp.eq.s32.totalorder %s27, 1
      %p58 = por %p56, %p57
      %p59 = scmp.ne.s32.totalorder %s51, %s54
      %p60 = scmp.eq.s32.totalorder %s27, 0
      %p61 = por %p59, %p60
      %p62 = scmp.ne.s32.totalorder %s51, %s54
      %p63 = scmp.eq.s32.totalorder %s32, 1
      %p64 = por %p62, %p63
      %p65 = scmp.ne.s32.totalorder %s54, %s55
      %p66 = scmp.eq.s32.totalorder %s32, 0
      %p67 = por %p65, %p66
      %p68 = scmp.ne.s32.totalorder %s54, %s55
      %p69 = scmp.eq.s32.totalorder %s33, 1
      %p70 = por %p68, %p69
      %p72 = scmp.ne.s32.totalorder %s55, %s71
      %p73 = scmp.eq.s32.totalorder %s33, 0
      %p74 = por %p72, %p73
      %s75 = ssub.s32 %s34, %s46
      %s76 = ssub.s32 %s35, %s42
      %s77 = sor.u32 %s75, %s76
      %p78 = scmp.eq.s32.totalorder %s77, 0
      %s80 = sadd.s32 %s79, 1
      %s81 = scalar_select %p78, %s79, %s80
      %p84 = pneg %p78
      %p85 = scmp.eq.s32.totalorder %s27, 1
      %p86 = por %p84, %p85
      %p87 = scmp.ne.s32.totalorder %s79, %s82
      %p88 = scmp.eq.s32.totalorder %s27, 0
      %p89 = por %p87, %p88
      %p90 = scmp.ne.s32.totalorder %s79, %s82
      %p91 = scmp.eq.s32.totalorder %s32, 1
      %p92 = por %p90, %p91
      %p93 = scmp.ne.s32.totalorder %s82, %s83
      %p94 = scmp.eq.s32.totalorder %s32, 0
      %p95 = por %p93, %p94
      %p96 = scmp.ne.s32.totalorder %s82, %s83
      %p97 = scmp.eq.s32.totalorder %s33, 1
      %p98 = por %p96, %p97
      %p100 = scmp.ne.s32.totalorder %s83, %s99
      %p101 = scmp.eq.s32.totalorder %s33, 0
      %p102 = por %p100, %p101
      %s103 = ssub.s32 %s34, %s46
      %s104 = ssub.s32 %s35, %s42
      %s105 = sor.u32 %s103, %s104
      %p106 = scmp.eq.s32.totalorder %s105, 0
      %s108 = sadd.s32 %s107, 1
      %s109 = scalar_select %p106, %s107, %s108
      %p112 = pneg %p106
      %p113 = scmp.eq.s32.totalorder %s27, 1
      %p114 = por %p112, %p113
      %p115 = scmp.ne.s32.totalorder %s107, %s110
      %p116 = scmp.eq.s32.totalorder %s27, 0
      %p117 = por %p115, %p116
      %p118 = scmp.ne.s32.totalorder %s107, %s110
      %p119 = scmp.eq.s32.totalorder %s32, 1
      %p120 = por %p118, %p119
      %p121 = scmp.ne.s32.totalorder %s110, %s111
      %p122 = scmp.eq.s32.totalorder %s32, 0
      %p123 = por %p121, %p122
      %p124 = scmp.ne.s32.totalorder %s110, %s111
      %p125 = scmp.eq.s32.totalorder %s33, 1
      %p126 = por %p124, %p125
      %p128 = scmp.ne.s32.totalorder %s111, %s127
      %p129 = scmp.eq.s32.totalorder %s33, 0
      %p130 = por %p128, %p129
      %p131 = scmp.le.s32.totalorder 1, %s27
      %p132 = scmp.lt.s32.totalorder %s27, 3
      %p133 = pnand %p131, %p132
      %p134 = pneg %p133
      // Predicated region
      $region9: #{tpu_custom_call.1} parent=5 // pred_check
        _
      $region10: #{tpu_custom_call.1} parent=5 // pred_check_branch
        %136 = sbr.rel (%p133) target = $region12
      $region11: #{tpu_custom_call.1} parent=5 // pred_region
        %s137 = ssub.s32 %s27, 1
      $region12: #{tpu_custom_call.1} parent=5 // pred_fallthru
        _
      %p138 = scmp.lt.s32.totalorder %s27, 2
      // Predicated region
      $region13: #{tpu_custom_call.1} parent=5 // pred_check
        %p139 = pneg %p138
      $region14: #{tpu_custom_call.1} parent=5 // pred_check_branch
        %141 = sbr.rel (%p139) target = $region16
      $region15: #{tpu_custom_call.1} parent=5 // pred_region
        // Predicated region
        $region17: #{tpu_custom_call.1} parent=15 // pred_check
          %p142 = pneg %p61
        $region18: #{tpu_custom_call.1} parent=15 // pred_check_branch
          %144 = sbr.rel (%p142) target = $region20
        $region19: #{tpu_custom_call.1} parent=15 // pred_region
          %s145 = sand.u32 %s51, 1
          %s146 = scalar_lea.sflag [#allocation6], %s145
          %s147 = sand.u32 %s51, 1
          %s148 = smul.addr %s147, 8
          %s149 = scalar_lea.vmem [#allocation5], %s148
          %s151 = ssub.s32 128, 128
          %152 = vsyncadd %s146, %s151
          %s153 = sadd.s32 %s35, %s34
          %s154 = smul.addr %s153, 128
          %s155 = scalar_lea.hbm %s2, %s154
          %s157 = sshll.u32 %s149, 4
          %s158 = int_to_ptr.vmem [resolvable:$true] %s157
          %160 = dma.hbm_to_vmem [thread:$0]  %s155, 128, %s158, %s146
        $region20: #{tpu_custom_call.1} parent=15 // pred_fallthru
          _
        // Predicated region
        $region21: #{tpu_custom_call.1} parent=15 // pred_check
          %p161 = pneg %p89
        $region22: #{tpu_custom_call.1} parent=15 // pred_check_branch
          %163 = sbr.rel (%p161) target = $region24
        $region23: #{tpu_custom_call.1} parent=15 // pred_region
          %s164 = sand.u32 %s79, 1
          %s165 = scalar_lea.sflag [#allocation9], %s164
          %s166 = sand.u32 %s79, 1
          %s167 = smul.addr %s166, 8
          %s168 = scalar_lea.vmem [#allocation8], %s167
          %s170 = ssub.s32 128, 128
          %171 = vsyncadd %s165, %s170
          %s172 = sadd.s32 %s35, %s34
          %s173 = smul.addr %s172, 128
          %s174 = scalar_lea.hbm %s3, %s173
          %s176 = sshll.u32 %s168, 4
          %s177 = int_to_ptr.vmem [resolvable:$true] %s176
          %179 = dma.hbm_to_vmem [thread:$0]  %s174, 128, %s177, %s165
        $region24: #{tpu_custom_call.1} parent=15 // pred_fallthru
          _
      $region16: #{tpu_custom_call.1} parent=5 // pred_fallthru
        _
      %p180 = scmp.le.s32.totalorder 1, %s27
      %p181 = scmp.lt.s32.totalorder %s27, 3
      %p182 = pnand %p180, %p181
      %p183 = pneg %p182
      // Predicated region
      $region25: #{tpu_custom_call.1} parent=5 // pred_check
        _
      $region26: #{tpu_custom_call.1} parent=5 // pred_check_branch
        %185 = sbr.rel (%p182) target = $region28
      $region27: #{tpu_custom_call.1} parent=5 // pred_region
        %s186 = ssub.s32 %s27, 1
        %s187 = sand.u32 %s54, 1
        %s188 = scalar_lea.sflag [#allocation6], %s187
        %s189 = sand.u32 %s54, 1
        %s190 = smul.addr %s189, 8
        %s191 = scalar_lea.vmem [#allocation5], %s190
        // Predicated region
        $region29: #{tpu_custom_call.1} parent=27 // pred_check
          %p192 = pneg %p67
        $region30: #{tpu_custom_call.1} parent=27 // pred_check_branch
          %194 = sbr.rel (%p192) target = $region32
        $region31: #{tpu_custom_call.1} parent=27 // pred_region
          %195 = dma.done %s188, 128
        $region32: #{tpu_custom_call.1} parent=27 // pred_fallthru
          _
        %s196 = sand.u32 %s82, 1
        %s197 = scalar_lea.sflag [#allocation9], %s196
        %s198 = sand.u32 %s82, 1
        %s199 = smul.addr %s198, 8
        %s200 = scalar_lea.vmem [#allocation8], %s199
        // Predicated region
        $region33: #{tpu_custom_call.1} parent=27 // pred_check
          %p201 = pneg %p95
        $region34: #{tpu_custom_call.1} parent=27 // pred_check_branch
          %203 = sbr.rel (%p201) target = $region36
        $region35: #{tpu_custom_call.1} parent=27 // pred_region
          %204 = dma.done %s197, 128
        $region36: #{tpu_custom_call.1} parent=27 // pred_fallthru
          _
        %s205 = sand.u32 %s54, 1
        %s206 = scalar_lea.sflag [#allocation6], %s205
        %s207 = sand.u32 %s54, 1
        %s208 = smul.addr %s207, 8
        %s209 = scalar_lea.vmem [#allocation5], %s208
        %p210 = pneg %p67
        %p211 = pneg %p64
        %s212 = sand.u32 %s82, 1
        %s213 = scalar_lea.sflag [#allocation9], %s212
        %s214 = sand.u32 %s82, 1
        %s215 = smul.addr %s214, 8
        %s216 = scalar_lea.vmem [#allocation8], %s215
        %p217 = pneg %p95
        %p218 = pneg %p92
        %p219 = pneg %p123
        %p220 = pneg %p120
        %s221 = sand.u32 %s110, 1
        %s222 = scalar_lea.sflag [#allocation7], %s221
        %s223 = sand.u32 %s110, 1
        %s224 = smul.addr %s223, 8
        %s225 = scalar_lea.vmem [#allocation10], %s224
        %s226 = sld [smem:[#allocation3 + %s36]]
        %s227 = sld [smem:[#allocation4 + %s36]]
        %v228 = vld [vmem:[%s191] sm:$0xff]
        %v229 = vld [vmem:[%s200] sm:$0xff]
        %v230 = vstv %s226
        %v231 = vmul.f32 %v230, %v228
        %v232 = vstv %s227
        %v233 = vmul.f32 %v232, %v229
        %v234 = vadd.f32 %v231, %v233
        %235 = vst [vmem:[%s225] sm:$0xff] %v234
        %s236 = sand.u32 %s110, 1
        %s237 = scalar_lea.sflag [#allocation7], %s236
        %s238 = sand.u32 %s110, 1
        %s239 = smul.addr %s238, 8
        %s240 = scalar_lea.vmem [#allocation10], %s239
        // Predicated region
        $region37: #{tpu_custom_call.1} parent=27 // pred_check
          %p241 = pneg %p120
        $region38: #{tpu_custom_call.1} parent=27 // pred_check_branch
          %243 = sbr.rel (%p241) target = $region40
        $region39: #{tpu_custom_call.1} parent=27 // pred_region
          %s245 = ssub.s32 128, 128
          %246 = vsyncadd %s237, %s245
          %s247 = sadd.s32 %s37, %s36
          %s248 = smul.addr %s247, 128
          %s249 = scalar_lea.hbm %s4, %s248
          %s251 = sshll.u32 %s240, 4
          %s252 = int_to_ptr.vmem [resolvable:$true] %s251
          %254 = dma.vmem_to_hbm [thread:$0]  %s252, 128, %s249, %s237
        $region40: #{tpu_custom_call.1} parent=27 // pred_fallthru
          _
      $region28: #{tpu_custom_call.1} parent=5 // pred_fallthru
        _
      %p255 = scmp.le.s32.totalorder 2, %s27
      // Predicated region
      $region41: #{tpu_custom_call.1} parent=5 // pred_check
        %p256 = pneg %p255
      $region42: #{tpu_custom_call.1} parent=5 // pred_check_branch
        %258 = sbr.rel (%p256) target = $region44
      $region43: #{tpu_custom_call.1} parent=5 // pred_region
        %s259 = ssub.s32 %s27, 2
        // Predicated region
        $region45: #{tpu_custom_call.1} parent=43 // pred_check
          %p260 = pneg %p126
        $region46: #{tpu_custom_call.1} parent=43 // pred_check_branch
          %262 = sbr.rel (%p260) target = $region48
        $region47: #{tpu_custom_call.1} parent=43 // pred_region
          %s263 = sand.u32 %s111, 1
          %s264 = scalar_lea.sflag [#allocation7], %s263
          %s265 = sand.u32 %s111, 1
          %s266 = smul.addr %s265, 8
          %s267 = scalar_lea.vmem [#allocation10], %s266
          %268 = dma.done %s264, 128
        $region48: #{tpu_custom_call.1} parent=43 // pred_fallthru
          _
      $region44: #{tpu_custom_call.1} parent=5 // pred_fallthru
        _
    $region6: #{tpu_custom_call.1} parent=1 // loop_footer
      %s31 = sadd.s32 1, %s27
    $region7: #{tpu_custom_call.1} parent=1 // loop_footer_branch
      %26 = sbr.rel target = $region3
    $region8: #{tpu_custom_call.1} parent=1 // loop_exit
      _
    %269 = vsyncpa [#allocation6], 1
    %s270 = scalar_lea.sflag [#allocation6], 1
    %271 = vsyncpa %s270, 1
    %272 = vsyncpa [#allocation9], 1
    %s273 = scalar_lea.sflag [#allocation9], 1
    %274 = vsyncpa %s273, 1
    %275 = vsyncpa [#allocation7], 1
    %s276 = scalar_lea.sflag [#allocation7], 1
    %277 = vsyncpa %s276, 1

</llo_original>
